<compile_context>
chip_gen: v5e
topology: v5e:2x2
jax: 0.10.0
libtpu: 0.0.40
codegen_flags: <defaults>
</compile_context>

<pallas_src>
import functools
import math

import jax
import jax.numpy as jnp
from jax.experimental import pallas as pl
from jax.experimental.pallas import tpu as pltpu

GNN_NODES_NUM = 16   # gnn_nodes_num (global in the reference code)
HIDDEN = 32          # hidden_channels


def _round_up(x, m):
    return (x + m - 1) // m * m


def _gat_kernel(idx_ref, embp_ref, o_ref, *, n, e, src_row, dst_row):
    """idx_ref: packed int32 indices; embp_ref: [NODES, 4H] bf16 pre-projected
    embedding table (q-cols pre-scaled by 1/sqrt(H)); o_ref: [N, H] f32."""
    nodes, fourh = embp_ref.shape
    h = fourh // 4

    # ---- Unpack indices (static, tile-aligned slices of one VMEM buffer) ----
    xid = idx_ref[0:n, 0:1]                          # [N, 1] column (node ids)
    src = idx_ref[src_row:src_row + e, 0:1]          # [E, 1] column (edge src)
    dst = idx_ref[dst_row:dst_row + 1, 0:e]          # [1, E] row    (edge dst)

    # ---- Fused embedding gather + Q/K/V/skip projection (one bf16 matmul) ---
    # proj[i] = emb_proj[xid[i]]  (exact: one-hot rows are exact in bf16 and
    # select exactly one table row; f32 accumulation).
    col_iota = jax.lax.broadcasted_iota(jnp.int32, (n, nodes), 1)
    onehot_x = (xid == col_iota).astype(jnp.bfloat16)               # [N, NODES]
    proj = jnp.dot(onehot_x, embp_ref[...],
                   preferred_element_type=jnp.float32)              # [N, 4H] f32

    q = proj[:, 0 * h:1 * h]      # already scaled by 1/sqrt(H)
    k = proj[:, 1 * h:2 * h]
    v = proj[:, 2 * h:3 * h]
    skip = proj[:, 3 * h:4 * h]

    # ---- Dense adjacency mask adj[dst, src] (bf16 one-hot matmul, exact) ----
    # oh_srcT is built pre-transposed ([E, N]) so the dot uses the standard
    # (1,0) contraction -> no XLU relayout.
    dst_iota = jax.lax.broadcasted_iota(jnp.int32, (n, e), 0)
    src_iota = jax.lax.broadcasted_iota(jnp.int32, (e, n), 1)
    oh_dst = (dst == dst_iota).astype(jnp.bfloat16)                 # [N, E]
    oh_srcT = (src == src_iota).astype(jnp.bfloat16)                # [E, N]
    adj_cnt = jnp.dot(oh_dst, oh_srcT,
                      preferred_element_type=jnp.float32)           # [N, N]
    adj = jnp.minimum(adj_cnt, 1.0)                 # dedup multi-edges

    # ---- Masked, numerically-stable softmax over source nodes (f32 math) ----
    # q/k/v are exact bf16 values (copied straight from the bf16 table), so the
    # casts below are lossless; only p (probabilities) picks up bf16 rounding.
    scores = jnp.dot(q.astype(jnp.bfloat16), k.astype(jnp.bfloat16).T,
                     preferred_element_type=jnp.float32)            # [N, N]
    masked = scores + (adj - 1.0) * 1e30            # -1e30 off-edge, +0 on-edge
    row_max = jnp.max(masked, axis=-1, keepdims=True)
    p = jnp.exp(masked - row_max) * adj             # exactly 0 where no edge
    denom = jnp.sum(p, axis=-1, keepdims=True)

    agg = jnp.dot(p.astype(jnp.bfloat16), v.astype(jnp.bfloat16),
                  preferred_element_type=jnp.float32)               # [N, H]
    inv = pl.reciprocal(jnp.maximum(denom, 1e-30), approx=True)     # EUP slot
    # No select needed: isolated-node rows of agg are exactly 0, inv is finite.
    o_ref[...] = (agg * inv + skip).astype(o_ref.dtype)

    # TODO(synk): if N grows, tile the dst dimension with a grid axis (adj and
    # scores are O(N^2) f32 and would exhaust v7x's 64 MiB VMEM first); set
    # vmem_limit_bytes explicitly at that point.


def my_gat_forward(x_idx, edge_index, params):
    """x_idx: int [N] node ids, edge_index: int [2, E] (row0=src, row1=dst)."""
    n = int(x_idx.shape[0])
    e = int(edge_index.shape[1])
    emb_proj = params["emb_proj"]                   # [NODES, 4H] bf16
    _, fourh = emb_proj.shape
    h = fourh // 4

    # Pack every integer index into ONE int32 buffer so the pallas_call needs
    # only 2 input DMAs (indices + pre-projected table).  Layout (all offsets
    # are multiples of 8 sublanes / lane offset 0, so in-kernel slices are
    # tile-aligned):
    #   rows [0, n)                  lane 0      : node ids (column)
    #   rows [src_row, src_row + e)  lane 0      : edge src (column, for oh_srcT)
    #   row  dst_row                 lanes [0, e): edge dst (row,    for oh_dst)
    src_row = _round_up(n, 8)
    dst_row = src_row + _round_up(e, 8)
    rows = _round_up(dst_row + 1, 8)
    lanes = max(128, _round_up(e, 128))
    idx = jnp.zeros((rows, lanes), jnp.int32)
    idx = idx.at[:n, 0].set(x_idx.astype(jnp.int32))
    idx = idx.at[src_row:src_row + e, 0].set(edge_index[0].astype(jnp.int32))
    idx = idx.at[dst_row, :e].set(edge_index[1].astype(jnp.int32))

    kernel = functools.partial(_gat_kernel, n=n, e=e,
                               src_row=src_row, dst_row=dst_row)
    vmem = pl.BlockSpec(memory_space=pltpu.MemorySpace.VMEM)
    out = pl.pallas_call(
        kernel,
        out_shape=jax.ShapeDtypeStruct((n, h), jnp.float32),
        in_specs=[vmem, vmem],
        out_specs=vmem,
    )(idx, emb_proj)
    return out
    # TODO(synk): when a batch of graphs exists, add a leading grid axis with
    # dimension_semantics=("parallel", ...) so v7x's second TensorCore gets
    # work, and lay >=4 graphs along the output lane axis so the output block
    # is a multiple of 128 lanes (unmasked vst instead of vst.msk).


def init_params(key, hidden=HIDDEN, num_nodes=GNN_NODES_NUM):
    ks = jax.random.split(key, 9)
    bound = 1.0 / math.sqrt(hidden)

    def lin_w(k):  # stored already transposed: [in, out]
        return jax.random.uniform(k, (hidden, hidden), jnp.float32, -bound, bound)

    def lin_b(k):
        return jax.random.uniform(k, (1, hidden), jnp.float32, -bound, bound)

    wq, bq = lin_w(ks[1]), lin_b(ks[2])
    wk, bk = lin_w(ks[3]), lin_b(ks[4])
    wv, bv = lin_w(ks[5]), lin_b(ks[6])
    ws, bs = lin_w(ks[7]), lin_b(ks[8])

    scale = 1.0 / math.sqrt(hidden)   # attention scale folded into q projection
    w_all = jnp.concatenate([wq * scale, wk, wv, ws], axis=1)   # [H, 4H]
    b_all = jnp.concatenate([bq * scale, bk, bv, bs], axis=1)   # [1, 4H]

    emb = jax.random.normal(ks[0], (num_nodes, hidden), jnp.float32)
    # Pre-fold embedding @ projection + bias: exact w.r.t. the in-kernel
    # one-hot gather; stored bf16 so every in-kernel matmul is single-pass MXU.
    emb_proj = (jnp.dot(emb, w_all) + b_all).astype(jnp.bfloat16)  # [NODES, 4H]

    return {"emb_proj": emb_proj}


if __name__ == "__main__":
    key = jax.random.PRNGKey(0)
    pkey, ekey = jax.random.split(key)
    params = init_params(pkey)

    # Node ids and a small random edge set (src -> dst).
    x_idx = jnp.arange(GNN_NODES_NUM, dtype=jnp.int32)
    num_edges = 24
    src = jax.random.randint(jax.random.fold_in(ekey, 0), (num_edges,), 0,
                             GNN_NODES_NUM, jnp.int32)
    dst = jax.random.randint(jax.random.fold_in(ekey, 1), (num_edges,), 0,
                             GNN_NODES_NUM, jnp.int32)
    edge_index = jnp.stack([src, dst], axis=0)                    # [2, E]

    out = jax.jit(my_gat_forward)(x_idx, edge_index, params)
    jax.block_until_ready(out)
    assert out.shape == (GNN_NODES_NUM, HIDDEN)
    assert jnp.all(jnp.isfinite(out))
    print("KERNEL_OK")
</pallas_src>

<mosaic_0001>
module attributes {stable_mosaic.version = 11 : i64} {
  func.func @_gat_kernel(%arg0: memref<48x128xi32, #tpu.memory_space<vmem>>, %arg1: memref<16x128xbf16, #tpu.memory_space<vmem>>, %arg2: memref<16x32xf32, #tpu.memory_space<vmem>>) attributes {dimension_semantics = [], scalar_prefetch = 0 : i64, scratch_operands = 0 : i64, tpu.core_type = #tpu.core_type<tc>} {
    %c0 = arith.constant 0 : index
    %c0_0 = arith.constant 0 : index
    %0 = vector.load %arg0[%c0, %c0_0] : memref<48x128xi32, #tpu.memory_space<vmem>>, vector<16x1xi32>
    %c16 = arith.constant 16 : index
    %c0_1 = arith.constant 0 : index
    %1 = vector.load %arg0[%c16, %c0_1] : memref<48x128xi32, #tpu.memory_space<vmem>>, vector<24x1xi32>
    %c40 = arith.constant 40 : index
    %c0_2 = arith.constant 0 : index
    %2 = vector.load %arg0[%c40, %c0_2] : memref<48x128xi32, #tpu.memory_space<vmem>>, vector<1x24xi32>
    %3 = tpu.iota {dimensions = array<i32: 1>} : vector<16x16xi32>
    %4 = vector.broadcast %0 : vector<16x1xi32> to vector<16x16xi32>
    %5 = arith.cmpi eq, %4, %3 : vector<16x16xi32>
    %6 = arith.extui %5 : vector<16x16xi1> to vector<16x16xi32>
    %7 = arith.sitofp %6 : vector<16x16xi32> to vector<16x16xf32>
    %8 = arith.truncf %7 : vector<16x16xf32> to vector<16x16xbf16>
    %c0_3 = arith.constant 0 : index
    %c0_4 = arith.constant 0 : index
    %9 = vector.load %arg1[%c0_3, %c0_4] : memref<16x128xbf16, #tpu.memory_space<vmem>>, vector<16x128xbf16>
    %cst = arith.constant dense<0.000000e+00> : vector<16x128xf32>
    %10 = tpu.matmul %8, %9, %cst {dimension_numbers = #tpu.dot_dimension_numbers<[1], [0], [0], [1], [0, 0, 1, 1], [], []>} : vector<16x16xbf16>, vector<16x128xbf16>, vector<16x128xf32> -> vector<16x128xf32>
    %11 = vector.extract_strided_slice %10 {offsets = [0, 0], sizes = [16, 32], strides = [1, 1]} : vector<16x128xf32> to vector<16x32xf32>
    %12 = vector.extract_strided_slice %10 {offsets = [0, 32], sizes = [16, 32], strides = [1, 1]} : vector<16x128xf32> to vector<16x32xf32>
    %13 = vector.extract_strided_slice %10 {offsets = [0, 64], sizes = [16, 32], strides = [1, 1]} : vector<16x128xf32> to vector<16x32xf32>
    %14 = vector.extract_strided_slice %10 {offsets = [0, 96], sizes = [16, 32], strides = [1, 1]} : vector<16x128xf32> to vector<16x32xf32>
    %15 = tpu.iota {dimensions = array<i32: 0>} : vector<16x24xi32>
    %16 = tpu.iota {dimensions = array<i32: 1>} : vector<24x16xi32>
    %17 = vector.broadcast %2 : vector<1x24xi32> to vector<16x24xi32>
    %18 = arith.cmpi eq, %17, %15 : vector<16x24xi32>
    %19 = arith.extui %18 : vector<16x24xi1> to vector<16x24xi32>
    %20 = arith.sitofp %19 : vector<16x24xi32> to vector<16x24xf32>
    %21 = arith.truncf %20 : vector<16x24xf32> to vector<16x24xbf16>
    %22 = vector.broadcast %1 : vector<24x1xi32> to vector<24x16xi32>
    %23 = arith.cmpi eq, %22, %16 : vector<24x16xi32>
    %24 = arith.extui %23 : vector<24x16xi1> to vector<24x16xi32>
    %25 = arith.sitofp %24 : vector<24x16xi32> to vector<24x16xf32>
    %26 = arith.truncf %25 : vector<24x16xf32> to vector<24x16xbf16>
    %cst_5 = arith.constant dense<0.000000e+00> : vector<16x16xf32>
    %27 = tpu.matmul %21, %26, %cst_5 {dimension_numbers = #tpu.dot_dimension_numbers<[1], [0], [0], [1], [0, 0, 1, 1], [], []>} : vector<16x24xbf16>, vector<24x16xbf16>, vector<16x16xf32> -> vector<16x16xf32>
    %cst_6 = arith.constant 1.000000e+00 : f32
    %28 = vector.broadcast %cst_6 : f32 to vector<16x16xf32>
    %29 = arith.minimumf %27, %28 : vector<16x16xf32>
    %30 = arith.truncf %11 : vector<16x32xf32> to vector<16x32xbf16>
    %31 = arith.truncf %12 : vector<16x32xf32> to vector<16x32xbf16>
    %32 = tpu.transpose %31, [1, 0] : vector<16x32xbf16> -> vector<32x16xbf16>
    %cst_7 = arith.constant dense<0.000000e+00> : vector<16x16xf32>
    %33 = tpu.matmul %30, %32, %cst_7 {dimension_numbers = #tpu.dot_dimension_numbers<[1], [0], [0], [1], [0, 0, 1, 1], [], []>} : vector<16x32xbf16>, vector<32x16xbf16>, vector<16x16xf32> -> vector<16x16xf32>
    %cst_8 = arith.constant 1.000000e+00 : f32
    %34 = vector.broadcast %cst_8 : f32 to vector<16x16xf32>
    %35 = arith.subf %29, %34 : vector<16x16xf32>
    %cst_9 = arith.constant 1.000000e+30 : f32
    %36 = vector.broadcast %cst_9 : f32 to vector<16x16xf32>
    %37 = arith.mulf %35, %36 : vector<16x16xf32>
    %38 = arith.addf %33, %37 : vector<16x16xf32>
    %cst_10 = arith.constant dense<0xFF800000> : vector<16xf32>
    %39 = vector.multi_reduction <maximumf>, %38, %cst_10 [1] : vector<16x16xf32> to vector<16xf32>
    %40 = vector.shape_cast %39 : vector<16xf32> to vector<16x1xf32>
    %41 = vector.broadcast %40 : vector<16x1xf32> to vector<16x16xf32>
    %42 = arith.subf %38, %41 : vector<16x16xf32>
    %43 = math.exp %42 : vector<16x16xf32>
    %44 = arith.mulf %43, %29 : vector<16x16xf32>
    %cst_11 = arith.constant dense<0.000000e+00> : vector<16xf32>
    %45 = vector.multi_reduction <add>, %44, %cst_11 [1] : vector<16x16xf32> to vector<16xf32>
    %46 = vector.shape_cast %45 : vector<16xf32> to vector<16x1xf32>
    %47 = arith.truncf %44 : vector<16x16xf32> to vector<16x16xbf16>
    %48 = arith.truncf %13 : vector<16x32xf32> to vector<16x32xbf16>
    %cst_12 = arith.constant dense<0.000000e+00> : vector<16x32xf32>
    %49 = tpu.matmul %47, %48, %cst_12 {dimension_numbers = #tpu.dot_dimension_numbers<[1], [0], [0], [1], [0, 0, 1, 1], [], []>} : vector<16x16xbf16>, vector<16x32xbf16>, vector<16x32xf32> -> vector<16x32xf32>
    %cst_13 = arith.constant 1.000000e-30 : f32
    %50 = vector.broadcast %cst_13 : f32 to vector<16x1xf32>
    %51 = arith.maximumf %46, %50 : vector<16x1xf32>
    %52 = tpu.reciprocal %51 {approx = true} : vector<16x1xf32> -> vector<16x1xf32>
    %53 = vector.broadcast %52 : vector<16x1xf32> to vector<16x32xf32>
    %54 = arith.mulf %49, %53 : vector<16x32xf32>
    %55 = arith.addf %54, %14 : vector<16x32xf32>
    %c0_14 = arith.constant 0 : index
    %c0_15 = arith.constant 0 : index
    %56 = vector.load %arg2[%c0_14, %c0_15] : memref<16x32xf32, #tpu.memory_space<vmem>>, vector<16x32xf32>
    tpu.vector_store %arg2[%c0_14, %c0_15], %55 {strides = array<i32>} : memref<16x32xf32, #tpu.memory_space<vmem>>, vector<16x32xf32>,
    return
  }
}

</mosaic_0001>

<llo_original>
// kernel: my_gat_forward.1
$region0: #{my_gat_forward.1}
  #allocation0 [shape = 'u32[]', space=smem, size = 0x4, offset = 0x4, fixed_abs, tag = 'smem constant byte address 0x4 - core index']
  #allocation1 [shape = 'u32[72,128]{1,0:T(1,128)}', space=vmem, size = 0x9000, scoped, tag = 'internal scratch']
  %s0 = inlined_call_operand.vmem [shape: s32[48,128], index: 0, kind: input, shape index: {}]
  %s1 = inlined_call_operand.vmem [shape: bf16[16,128], index: 1, kind: input, shape index: {}]
  %s2 = inlined_call_operand.hbm [shape: f32[16,32], index: 2, kind: output, shape index: {}]
  %s3 = sld [smem:[#allocation0]]
  $region18: #{my_gat_forward.1} parent=0
    _
  %s5 = ssub.s32 1, %s3
  %s6 = scalar_select 0, %s5, %s3
  $region1: #{my_gat_forward.1} parent=0
    #allocation2 [shape = 'u8[8192]{0}', space=vmem, size = 0x2000, scoped, tag = 'output window, operand 0, single buffered']
    #allocation3 [shape = 's32[1]{0}', space=sflag, size = 0x4, scoped, tag = 'scoped memory for my_gat_forward.1']
    %7 = vsyncpa [#allocation3], 0
    // Predicated region
    $region2: #{my_gat_forward.1} parent=1 // pred_check
      _
    $region3: #{my_gat_forward.1} parent=1 // pred_check_branch
      %9 = sbr.rel (0) target = $region5
    $region4: #{my_gat_forward.1} parent=1 // pred_region
      _
    $region5: #{my_gat_forward.1} parent=1 // pred_fallthru
      _
    // Predicated region
    $region6: #{my_gat_forward.1} parent=1 // pred_check
      _
    $region7: #{my_gat_forward.1} parent=1 // pred_check_branch
      %11 = sbr.rel (0) target = $region9
    $region8: #{my_gat_forward.1} parent=1 // pred_region
      _
    $region9: #{my_gat_forward.1} parent=1 // pred_fallthru
      _
    %v13 = vld [vmem:[%s0] sm:$0xff]
    %v14 = vld [vmem:[%s0 + $0x8] sm:$0xff]
    %v15 = vld [vmem:[%s0 + $0x10] sm:$0xff]
    %v16 = vld [vmem:[%s0 + $0x18] sm:$0xff]
    %v17 = vld [vmem:[%s0 + $0x20] sm:$0xff]
    %v18 = vld [vmem:[%s0 + $0x28] sm:$0x1]
    %v19 = vlaneseq
    %v20 = vand.u32 %v19, 127
    %21 = vset.pattern.permute.xlu0 0
    %22 = vperm.xlu0 %21, %v13
    %v23 = vpop.permute.xlu0 %22
    %24 = vset.pattern.permute.xlu0 0
    %25 = vperm.xlu0 %24, %v14
    %v26 = vpop.permute.xlu0 %25
    %vm27 = vcmp.eq.s32.totalorder %v23, %v20
    %vm28 = vcmp.eq.s32.totalorder %v26, %v20
    %v29 = vsel %vm27, 1, 0
    %v30 = vsel %vm28, 1, 0
    %v31 = vcvt.s32.f32 %v29
    %v32 = vcvt.s32.f32 %v30
    %v33 = vpack.c.bf16 %v32, %v31
    %v34 = vld [vmem:[%s1] sm:$0xf]
    %v35 = vld [vmem:[%s1 + $0x4] sm:$0xf]
    %v38 = vunpack.c.l.b16 %v34
    %v39 = vunpack.c.l.b16 %v35
    %v40 = vpack.c.b16 %v39, %v38
    %vm42 = vcmask 130048
    %v44 = vsel %vm42, %v33, 0
    %46 = vmatpush.bf16.msra.mxu0 0
    %47 = vmatpush.bf16.msra.mxu0 0
    %48 = vmatpush.bf16.msra.mxu0 0
    %49 = vmatpush.bf16.msra.mxu0 0
    %50 = vmatpush.bf16.msra.mxu0 0
    %51 = vmatpush.bf16.msra.mxu0 0
    %52 = vmatpush.bf16.msra.mxu0 0
    %53 = vmatpush.bf16.msra.mxu0 %v40
    %54 = vmatmul.bf16.gmra.mxu0 %v44
    %v55 = vpop.f32.mrf.mxu0
    %v56 = vadd.f32 0.0, %v55
    %v57 = vpop.f32.mrf.mxu0
    %v58 = vadd.f32 0.0, %v57
    %59 = vdwg.mxu0
    %v60 = vlaneseq
    %v61 = vshrl.u32 %v60, 7
    %v62 = vadd.s32 %v61, 8
    %v63 = vperm.slane %v18, 0
    %vm64 = vcmp.eq.s32.totalorder %v63, %v61
    %vm65 = vcmp.eq.s32.totalorder %v63, %v62
    %v66 = vsel %vm64, 1, 0
    %v67 = vsel %vm65, 1, 0
    %v68 = vcvt.s32.f32 %v66
    %v69 = vcvt.s32.f32 %v67
    %v70 = vpack.c.bf16 %v69, %v68
    %71 = vset.pattern.permute.xlu0 0
    %72 = vperm.xlu0 %71, %v15
    %v73 = vpop.permute.xlu0 %72
    %74 = vset.pattern.permute.xlu0 0
    %75 = vperm.xlu0 %74, %v16
    %v76 = vpop.permute.xlu0 %75
    %77 = vset.pattern.permute.xlu0 0
    %78 = vperm.xlu0 %77, %v17
    %v79 = vpop.permute.xlu0 %78
    %vm80 = vcmp.eq.s32.totalorder %v73, %v20
    %vm81 = vcmp.eq.s32.totalorder %v76, %v20
    %vm82 = vcmp.eq.s32.totalorder %v79, %v20
    %v83 = vsel %vm80, 1, 0
    %v84 = vsel %vm81, 1, 0
    %v85 = vsel %vm82, 1, 0
    %v86 = vcvt.s32.f32 %v83
    %v87 = vcvt.s32.f32 %v84
    %v88 = vcvt.s32.f32 %v85
    %v89 = vpack.c.bf16 %v87, %v86
    %v90 = vpack.c.bf16 %v88, %v88
    %vm91 = vcmask 195584
    %v93 = vsel %vm91, %v70, 0
    %vm95 = vcmask 1043456
    %v97 = vsel %vm95, %v90, 0
    %99 = vmatpush.bf16.msra.mxu0 0
    %100 = vmatpush.bf16.msra.mxu0 0
    %101 = vmatpush.bf16.msra.mxu0 0
    %102 = vmatpush.bf16.msra.mxu0 0
    %103 = vmatpush.bf16.msra.mxu0 0
    %104 = vmatpush.bf16.msra.mxu0 0
    %105 = vmatpush.bf16.msra.mxu0 %v97
    %106 = vmatpush.bf16.msra.mxu0 %v89
    %107 = vmatmul.bf16.gmra.mxu0 %v93
    %v108 = vpop.f32.mrf.mxu0
    %v109 = vadd.f32 0.0, %v108
    %v110 = vpop.f32.mrf.mxu0
    %v111 = vadd.f32 0.0, %v110
    %112 = vdwg.mxu0
    %v113 = vmin.f32 %v109, 1.0
    %v114 = vmin.f32 %v111, 1.0
    %v115 = vpack.c.bf16 %v58, %v56
    %v116 = vsub.f32 %v113, 1.0
    %v117 = vsub.f32 %v114, 1.0
    %v118 = vmul.f32 %v116, 1e+30
    %v119 = vmul.f32 %v117, 1e+30
    %121 = vrot.lane.b32.xlu0 %v115, 96
    %v122 = vpop.permute.xlu0 %121
    %vm123 = vcmask 261120
    %v125 = vsel %vm123, %v115, 0
    %v128 = vsel %vm123, %v122, 0
    %130 = vmatpush.bf16.xpose.msra.mxu0 0
    %131 = vmatpush.bf16.xpose.msra.mxu0 0
    %132 = vmatpush.bf16.xpose.msra.mxu0 0
    %133 = vmatpush.bf16.xpose.msra.mxu0 0
    %134 = vmatpush.bf16.xpose.msra.mxu0 0
    %135 = vmatpush.bf16.xpose.msra.mxu0 0
    %136 = vmatpush.bf16.xpose.msra.mxu0 0
    %137 = vmatpush.bf16.xpose.msra.mxu0 %v128
    %138 = vmatmul.bf16.gmra.mxu0 %v125
    %v139 = vpop.f32.mrf.mxu0
    %v140 = vadd.f32 %v118, %v139
    %v141 = vpop.f32.mrf.mxu0
    %v142 = vadd.f32 %v119, %v141
    %143 = vdwg.mxu0
    %v144 = vsel %vm42, %v140, -inf
    %145 = vmax.xlane.f32.xlu0 %v144
    %v146 = vpop.xlane.xlu0 %145
    %v147 = vsel %vm42, %v142, -inf
    %148 = vmax.xlane.f32.xlu0 %v147
    %v149 = vpop.xlane.xlu0 %148
    %v150 = vsub.f32 %v140, %v146
    %v151 = vsub.f32 %v142, %v149
    %v152 = vmul.f32 %v150, 1.442695
    %v153 = vpow.pop %v152
    %v154 = vmul.f32 %v151, 1.442695
    %v155 = vpow.pop %v154
    %v156 = vmul.f32 %v153, %v113
    %v157 = vmul.f32 %v155, %v114
    %v158 = vsel %vm42, %v156, 0.0
    %159 = vadd.xlane.f32.xlu0 %v158
    %v160 = vpop.xlane.xlu0 %159
    %v161 = vsel %vm42, %v157, 0.0
    %162 = vadd.xlane.f32.xlu0 %v161
    %v163 = vpop.xlane.xlu0 %162
    %v164 = vpack.c.bf16 %v157, %v156
    %165 = vrot.lane.b32.xlu0 %v115, 64
    %v166 = vpop.permute.xlu0 %165
    %v169 = vsel %vm42, %v164, 0
    %171 = vmatpush.bf16.msra.mxu0 0
    %172 = vmatpush.bf16.msra.mxu0 0
    %173 = vmatpush.bf16.msra.mxu0 0
    %174 = vmatpush.bf16.msra.mxu0 0
    %175 = vmatpush.bf16.msra.mxu0 0
    %176 = vmatpush.bf16.msra.mxu0 0
    %177 = vmatpush.bf16.msra.mxu0 0
    %178 = vmatpush.bf16.msra.mxu0 %v166
    %179 = vmatmul.bf16.gmra.mxu0 %v169
    %v180 = vpop.f32.mrf.mxu0
    %v181 = vadd.f32 0.0, %v180
    %v182 = vpop.f32.mrf.mxu0
    %v183 = vadd.f32 0.0, %v182
    %184 = vdwg.mxu0
    %v185 = vmax.f32 %v160, 1e-30
    %v186 = vmax.f32 %v163, 1e-30
    %v187 = vrcp.pop %v185
    %v188 = vrcp.pop %v186
    %v189 = vmul.f32 %v181, %v187
    %v190 = vmul.f32 %v183, %v188
    %193 = vrot.lane.b32.xlu0 %v56, 32
    %v194 = vpop.permute.xlu0 %193
    %195 = vrot.lane.b32.xlu0 %v58, 32
    %v196 = vpop.permute.xlu0 %195
    %v199 = vadd.f32 %v189, %v194
    %v200 = vadd.f32 %v190, %v196
    %201 = vst.msk [vmem:[#allocation2] sm:$0xff] %vm123, %v199
    %202 = vst.msk [vmem:[#allocation2 + $0x8] sm:$0xff] %vm123, %v200
    // Predicated region
    $region10: #{my_gat_forward.1} parent=1 // pred_check
      _
    $region11: #{my_gat_forward.1} parent=1 // pred_check_branch
      %204 = sbr.rel (0) target = $region13
    $region12: #{my_gat_forward.1} parent=1 // pred_region
      %206 = vsyncadd [#allocation3], 0
      %s207 = sshll.u32 [#allocation2], 4
      %s208 = int_to_ptr.vmem [resolvable:$true] %s207
      %s209 = sshll.u32 %s2, 4
      %s210 = int_to_ptr.hbm [resolvable:$true] %s209
      %215 = dma.vmem_to_hbm [thread:$0]  %s208, 256, %s210, [#allocation3], 128, 128, 8
    $region13: #{my_gat_forward.1} parent=1 // pred_fallthru
      _
    // Predicated region
    $region14: #{my_gat_forward.1} parent=1 // pred_check
      _
    $region15: #{my_gat_forward.1} parent=1 // pred_check_branch
      %217 = sbr.rel (0) target = $region17
    $region16: #{my_gat_forward.1} parent=1 // pred_region
      %219 = dma.done [#allocation3], 256
    $region17: #{my_gat_forward.1} parent=1 // pred_fallthru
      _
    %220 = vsyncpa [#allocation3], 1

</llo_original>
